<compile_context>
chip_gen: v7x
topology: tpu7x:2x2x1
jax: 0.10.0
libtpu: 0.0.40
codegen_flags: <defaults>
</compile_context>

<pallas_src>
import jax
import jax.numpy as jnp
from jax.experimental import pallas as pl
from jax.experimental.pallas import tpu as pltpu


def _two_layer_kernel(xT_ref, params_ref, b2_ref, oT_ref):
    xT = xT_ref[...]                       # (1, BP)  batch on the lane axis
    w1 = params_ref[0]                     # (H, 1)   zero-cost static slab views
    b1 = params_ref[1]                     # (H, 1)
    w2 = params_ref[2]                     # (H, 1)

    # Layer 1: VPU broadcast outer product (K=1 -> no MXU), bias, ReLU.
    h = jnp.maximum(w1 * xT + b1, 0.0)     # (H, BP)

    # Layer 2: weighted sublane reduction (N=1 -> no MXU, XLU slot) + SMEM scalar bias.
    y = jnp.sum(w2 * h, axis=0, keepdims=True) + b2_ref[0, 0]   # (1, BP)
    oT_ref[...] = y.astype(oT_ref.dtype)   # single unmasked lane-dense store


def pack_params(w1, b1, w2, b2):
    """One-time parameter packing (hoisted out of the per-call hot path).

    w1: (H, in=1), b1: (H,), w2: (out=1, H), b2: (out=1,)
    -> params (3, H, 1) f32 slab for one VMEM DMA, b2 as (1, 1) for SMEM.
    """
    H = w1.shape[0]
    params = jnp.stack(
        [w1.reshape(H, 1).astype(jnp.float32),
         b1.reshape(H, 1).astype(jnp.float32),
         w2.reshape(H, 1).astype(jnp.float32)],
        axis=0,
    )                                                   # (3, H, 1)
    b2_2d = jnp.asarray(b2, jnp.float32).reshape(1, 1)  # scalar bias, SMEM
    return params, b2_2d


@jax.jit
def two_layer_net(x, params, b2_2d):
    """PyTorch-Linear semantics: x (B, 1) -> y (B, 1)."""
    B = x.shape[0]
    BP = ((B + 127) // 128) * 128          # pad lanes to a full vreg

    # (B,1)->(1,B) is a pure reshape (a dim is 1); with allow_input_fusion the
    # reshape+pad fuses into the pallas_call input instead of a standalone relayout op.
    xT = jnp.pad(x.reshape(1, B).astype(jnp.float32), ((0, 0), (0, BP - B)))

    yT = pl.pallas_call(
        _two_layer_kernel,
        out_shape=jax.ShapeDtypeStruct((1, BP), jnp.float32),
        in_specs=[
            pl.BlockSpec(memory_space=pltpu.MemorySpace.VMEM),   # xT     (1, BP)
            pl.BlockSpec(memory_space=pltpu.MemorySpace.VMEM),   # params (3, H, 1)
            pl.BlockSpec(memory_space=pltpu.MemorySpace.SMEM),   # b2     (1, 1)
        ],
        out_specs=pl.BlockSpec(memory_space=pltpu.MemorySpace.VMEM),
        compiler_params=pltpu.CompilerParams(
            allow_input_fusion=[True, False, False],             # fuse x relayout only
        ),
    )(xT, params, b2_2d)

    return yT[:, :B].reshape(B, 1)         # drop lane padding, back to PyTorch (B, 1)


if __name__ == "__main__":
    # Shapes implied by the module / script: x is (100, 1); hidden=32, output=1.
    batch, input_size, hidden_size, output_size = 100, 1, 32, 1

    key = jax.random.PRNGKey(0)
    kx, kw1, kb1, kw2, kb2 = jax.random.split(key, 5)

    x = jax.random.uniform(kx, (batch, input_size), dtype=jnp.float32)

    # PyTorch nn.Linear init: U(-1/sqrt(fan_in), 1/sqrt(fan_in)), deterministic here.
    bound1 = 1.0 / (input_size ** 0.5)
    w1 = jax.random.uniform(kw1, (hidden_size, input_size), jnp.float32,
                            -bound1, bound1)
    b1 = jax.random.uniform(kb1, (hidden_size,), jnp.float32, -bound1, bound1)

    bound2 = 1.0 / (hidden_size ** 0.5)
    w2 = jax.random.uniform(kw2, (output_size, hidden_size), jnp.float32,
                            -bound2, bound2)
    b2 = jax.random.uniform(kb2, (output_size,), jnp.float32, -bound2, bound2)

    # Parameter packing done once, outside the per-call path.
    params, b2_2d = pack_params(w1, b1, w2, b2)
    params, b2_2d = jax.block_until_ready((params, b2_2d))

    y = two_layer_net(x, params, b2_2d)
    y = jax.block_until_ready(y)

    # Pure-JAX reference (same semantics as the PyTorch forward).
    ref = jnp.maximum(x @ w1.T + b1, 0.0) @ w2.T + b2
    assert y.shape == (batch, output_size)
    assert jnp.allclose(y, ref, atol=1e-5, rtol=1e-5)

    print("KERNEL_OK")
</pallas_src>

<mosaic_0001>
module attributes {stable_mosaic.version = 11 : i64} {
  func.func @_two_layer_kernel(%arg0: memref<1x128xf32, #tpu.memory_space<vmem>>, %arg1: memref<3x32x1xf32, #tpu.memory_space<vmem>>, %arg2: memref<1x1xf32, #tpu.memory_space<smem>>, %arg3: memref<1x128xf32, #tpu.memory_space<vmem>>) attributes {dimension_semantics = [], scalar_prefetch = 0 : i64, scratch_operands = 0 : i64, tpu.core_type = #tpu.core_type<tc>} {
    %c0 = arith.constant 0 : index
    %c0_0 = arith.constant 0 : index
    %0 = vector.load %arg0[%c0, %c0_0] : memref<1x128xf32, #tpu.memory_space<vmem>>, vector<1x128xf32>
    %c0_1 = arith.constant 0 : index
    %c0_2 = arith.constant 0 : index
    %c0_3 = arith.constant 0 : index
    %1 = vector.load %arg1[%c0_1, %c0_2, %c0_3] : memref<3x32x1xf32, #tpu.memory_space<vmem>>, vector<1x32x1xf32>
    %2 = vector.shape_cast %1 : vector<1x32x1xf32> to vector<32x1xf32>
    %c1 = arith.constant 1 : index
    %c0_4 = arith.constant 0 : index
    %c0_5 = arith.constant 0 : index
    %3 = vector.load %arg1[%c1, %c0_4, %c0_5] : memref<3x32x1xf32, #tpu.memory_space<vmem>>, vector<1x32x1xf32>
    %4 = vector.shape_cast %3 : vector<1x32x1xf32> to vector<32x1xf32>
    %c2 = arith.constant 2 : index
    %c0_6 = arith.constant 0 : index
    %c0_7 = arith.constant 0 : index
    %5 = vector.load %arg1[%c2, %c0_6, %c0_7] : memref<3x32x1xf32, #tpu.memory_space<vmem>>, vector<1x32x1xf32>
    %6 = vector.shape_cast %5 : vector<1x32x1xf32> to vector<32x1xf32>
    %7 = vector.broadcast %2 : vector<32x1xf32> to vector<32x128xf32>
    %8 = vector.broadcast %0 : vector<1x128xf32> to vector<32x128xf32>
    %9 = arith.mulf %7, %8 : vector<32x128xf32>
    %10 = vector.broadcast %4 : vector<32x1xf32> to vector<32x128xf32>
    %11 = arith.addf %9, %10 : vector<32x128xf32>
    %cst = arith.constant 0.000000e+00 : f32
    %12 = vector.broadcast %cst : f32 to vector<32x128xf32>
    %13 = arith.maximumf %11, %12 : vector<32x128xf32>
    %14 = vector.broadcast %6 : vector<32x1xf32> to vector<32x128xf32>
    %15 = arith.mulf %14, %13 : vector<32x128xf32>
    %cst_8 = arith.constant dense<0.000000e+00> : vector<128xf32>
    %16 = vector.multi_reduction <add>, %15, %cst_8 [0] : vector<32x128xf32> to vector<128xf32>
    %17 = vector.shape_cast %16 : vector<128xf32> to vector<1x128xf32>
    %c0_9 = arith.constant 0 : index
    %c0_10 = arith.constant 0 : index
    %18 = memref.load %arg2[%c0_9, %c0_10] : memref<1x1xf32, #tpu.memory_space<smem>>
    %19 = vector.broadcast %18 : f32 to vector<1x128xf32>
    %20 = arith.addf %17, %19 : vector<1x128xf32>
    %c0_11 = arith.constant 0 : index
    %c0_12 = arith.constant 0 : index
    %21 = vector.load %arg3[%c0_11, %c0_12] : memref<1x128xf32, #tpu.memory_space<vmem>>, vector<1x128xf32>
    tpu.vector_store %arg3[%c0_11, %c0_12], %20 {strides = array<i32>} : memref<1x128xf32, #tpu.memory_space<vmem>>, vector<1x128xf32>,
    return
  }
}

</mosaic_0001>

<llo_original>
// kernel: two_layer_net.2
$region0: #{two_layer_net.2}
  #allocation0 [shape = 'u32[]', space=smem, size = 0x4, offset = 0x4, fixed_abs, tag = 'smem constant byte address 0x4 - core index']
  #allocation1 [shape = 'u32[144,128]{1,0:T(1,128)}', space=vmem, size = 0x12000, scoped, tag = 'internal scratch']
  #allocation2 [shape = 'u32[2048]{0}', space=vmem, size = 0x2000, scoped, tag = 'scoped memory for two_layer_net.2']
  #allocation3 [shape = 'u32[2048]{0}', space=vmem, size = 0x2000, scoped, tag = 'scoped memory for two_layer_net.2']
  #allocation4 [shape = 'u32[2048]{0}', space=vmem, size = 0x2000, scoped, tag = 'scoped memory for two_layer_net.2']
  #allocation5 [shape = 'u32[2048]{0}', space=vmem, size = 0x2000, scoped, tag = 'scoped memory for two_layer_net.2']
  #allocation6 [shape = 'u32[2048]{0}', space=vmem, size = 0x2000, scoped, tag = 'scoped memory for two_layer_net.2']
  #allocation7 [shape = 'f32[1,1]{1,0:T(1,128)S(6)}', space=smem, size = 0x200, scoped, tag = 'scoped memory for two_layer_net.2']
  %s0 = inlined_call_operand.vmem [shape: f32[3,32,1], index: 0, kind: input, shape index: {}]
  %s1 = inlined_call_operand.<no memory space> [shape: f32[1,1], index: 1, kind: input, shape index: {}]
  %s2 = inlined_call_operand.vmem [shape: f32[1,100], index: 2, kind: input, shape index: {}]
  %s3 = inlined_call_operand.<no memory space> [shape: f32[], index: 3, kind: input, shape index: {}]
  %s4 = inlined_call_operand.vmem [shape: f32[1,128], index: 4, kind: output, shape index: {}]
  %s5 = sld [smem:[#allocation0]]
  $region22: #{two_layer_net.2} parent=0
    _
  %s7 = ssub.s32 1, %s5
  %s8 = scalar_select 0, %s7, %s5
  %v9 = vstv %s3
  %10 = sst [smem:[#allocation7]] %s1
  $region1: #{two_layer_net.2} parent=0
    #allocation8 [shape = 'u8[512]{0}', space=vmem, size = 0x400, dematerialized = true, scoped, tag = 'FusionAdapter Buffer %fusion.1 = f32[1,128]{1,0:T(1,128)} fusion(%param_2.1, %param_3), kind=kLoop, calls=%fused_computation.1.clone, metadata={op_name="jit(two_layer_net)/jit(_pad)/pad" stack_frame_id=8}']
    // Predicated region
    $region2: #{two_layer_net.2} parent=1 // pred_check
      _
    $region3: #{two_layer_net.2} parent=1 // pred_check_branch
      %12 = sbr.rel (0) target = $region5
    $region4: #{two_layer_net.2} parent=1 // pred_region
      _
    $region5: #{two_layer_net.2} parent=1 // pred_fallthru
      _
    // Predicated region
    $region6: #{two_layer_net.2} parent=1 // pred_check
      _
    $region7: #{two_layer_net.2} parent=1 // pred_check_branch
      %14 = sbr.rel (0) target = $region9
    $region8: #{two_layer_net.2} parent=1 // pred_region
      _
    $region9: #{two_layer_net.2} parent=1 // pred_fallthru
      _
    // Predicated region
    $region10: #{two_layer_net.2} parent=1 // pred_check
      _
    $region11: #{two_layer_net.2} parent=1 // pred_check_branch
      %16 = sbr.rel (0) target = $region13
    $region12: #{two_layer_net.2} parent=1 // pred_region
      _
    $region13: #{two_layer_net.2} parent=1 // pred_fallthru
      _
    %v17 = vld [vmem:[%s2] sm:$0x1]
    %v18 = vlaneseq
    %v19 = vshrl.u32 %v18, 7
    %vm21 = vcmp.lt.s32.totalorder %v19, 1
    %v22 = vsel %vm21, %v17, %v9
    %v23 = vlaneseq
    %v24 = vand.u32 %v23, 127
    %vm26 = vcmp.lt.s32.totalorder %v24, 100
    %v27 = vsel %vm26, %v22, %v9
    %29 = vst [vmem:[#allocation8] sm:$0x1] %v27
    %v30 = vld [vmem:[#allocation8] sm:$0x1]
    %v31 = vld [vmem:[%s0] sm:$0xff]
    %v32 = vld [vmem:[%s0 + $0x8] sm:$0xff]
    %v33 = vld [vmem:[%s0 + $0x10] sm:$0xff]
    %v34 = vld [vmem:[%s0 + $0x18] sm:$0xff]
    %s35 = scalar_lea.vmem %s0, 32
    %v36 = vld [vmem:[%s35] sm:$0xff]
    %v37 = vld [vmem:[%s35 + $0x8] sm:$0xff]
    %v38 = vld [vmem:[%s35 + $0x10] sm:$0xff]
    %v39 = vld [vmem:[%s35 + $0x18] sm:$0xff]
    %s40 = scalar_lea.vmem %s0, 64
    %v41 = vld [vmem:[%s40] sm:$0xff]
    %v42 = vld [vmem:[%s40 + $0x8] sm:$0xff]
    %v43 = vld [vmem:[%s40 + $0x10] sm:$0xff]
    %v44 = vld [vmem:[%s40 + $0x18] sm:$0xff]
    %46 = vset.pattern.permute.xlu0 0
    %47 = vperm.xlu0 %46, %v31
    %v48 = vpop.permute.xlu0 %47
    %51 = vset.pattern.permute.xlu0 0
    %52 = vperm.xlu0 %51, %v32
    %v53 = vpop.permute.xlu0 %52
    %56 = vset.pattern.permute.xlu0 0
    %57 = vperm.xlu0 %56, %v33
    %v58 = vpop.permute.xlu0 %57
    %61 = vset.pattern.permute.xlu0 0
    %62 = vperm.xlu0 %61, %v34
    %v63 = vpop.permute.xlu0 %62
    %v66 = vlaneseq
    %v67 = vshrl.u32 %v66, 7
    %v68 = vsub.s32 0, %v67
    %v69 = vrot.slane %v30, %v68
    %v71 = vmul.f32 %v48, %v69
    %v72 = vmul.f32 %v53, %v69
    %v73 = vmul.f32 %v58, %v69
    %v74 = vmul.f32 %v63, %v69
    %76 = vset.pattern.permute.xlu0 0
    %77 = vperm.xlu0 %76, %v36
    %v78 = vpop.permute.xlu0 %77
    %81 = vset.pattern.permute.xlu0 0
    %82 = vperm.xlu0 %81, %v37
    %v83 = vpop.permute.xlu0 %82
    %86 = vset.pattern.permute.xlu0 0
    %87 = vperm.xlu0 %86, %v38
    %v88 = vpop.permute.xlu0 %87
    %91 = vset.pattern.permute.xlu0 0
    %92 = vperm.xlu0 %91, %v39
    %v93 = vpop.permute.xlu0 %92
    %v95 = vadd.f32 %v71, %v78
    %v96 = vadd.f32 %v72, %v83
    %v97 = vadd.f32 %v73, %v88
    %v98 = vadd.f32 %v74, %v93
    %v99 = vmax.f32 %v95, 0.0
    %v100 = vmax.f32 %v96, 0.0
    %v101 = vmax.f32 %v97, 0.0
    %v102 = vmax.f32 %v98, 0.0
    %104 = vset.pattern.permute.xlu0 0
    %105 = vperm.xlu0 %104, %v41
    %v106 = vpop.permute.xlu0 %105
    %109 = vset.pattern.permute.xlu0 0
    %110 = vperm.xlu0 %109, %v42
    %v111 = vpop.permute.xlu0 %110
    %114 = vset.pattern.permute.xlu0 0
    %115 = vperm.xlu0 %114, %v43
    %v116 = vpop.permute.xlu0 %115
    %119 = vset.pattern.permute.xlu0 0
    %120 = vperm.xlu0 %119, %v44
    %v121 = vpop.permute.xlu0 %120
    %v123 = vmul.f32 %v106, %v99
    %v124 = vmul.f32 %v111, %v100
    %v125 = vmul.f32 %v116, %v101
    %v126 = vmul.f32 %v121, %v102
    %v127 = vadd.f32 %v123, %v124
    %v128 = vadd.f32 %v127, %v125
    %v129 = vadd.f32 %v128, %v126
    %v130 = vrot.slane %v129, 4
    %v131 = vadd.f32 %v129, %v130
    %v132 = vrot.slane %v131, 2
    %v133 = vadd.f32 %v131, %v132
    %v134 = vrot.slane %v133, 1
    %v135 = vadd.f32 %v133, %v134
    %s136 = sld [smem:[#allocation7]]
    %v137 = vstv %s136
    %v138 = vadd.f32 %v135, %v137
    %139 = vst [vmem:[%s4] sm:$0x1] %v138
    // Predicated region
    $region14: #{two_layer_net.2} parent=1 // pred_check
      _
    $region15: #{two_layer_net.2} parent=1 // pred_check_branch
      %141 = sbr.rel (0) target = $region17
    $region16: #{two_layer_net.2} parent=1 // pred_region
      _
    $region17: #{two_layer_net.2} parent=1 // pred_fallthru
      _
    // Predicated region
    $region18: #{two_layer_net.2} parent=1 // pred_check
      _
    $region19: #{two_layer_net.2} parent=1 // pred_check_branch
      %143 = sbr.rel (0) target = $region21
    $region20: #{two_layer_net.2} parent=1 // pred_region
      _
    $region21: #{two_layer_net.2} parent=1 // pred_fallthru
      _

</llo_original>
